<compile_context>
chip_gen: v7x
topology: tpu7x:2x2x1
jax: 0.10.0
libtpu: 0.0.40
codegen_flags: <defaults>
</compile_context>

<pallas_src>
import jax
import jax.numpy as jnp
from jax.experimental import pallas as pl
from jax.experimental.pallas import tpu as pltpu


# ----------------------------------------------------------------------------
# hierarchy constants: num_classes = [l5(fine)=32, l4=16, l3=8, l2=4, l1=2]
# ----------------------------------------------------------------------------
NUM_CLASSES = [32, 16, 8, 4, 2]
FEATURE_SIZE = NUM_CLASSES[0]                      # assert feature_size == num_classes[0]
# classifier_1..classifier_5 widths (coarse -> fine) and lane offsets in the
# concatenated layout.
HEAD_SIZES = [NUM_CLASSES[4], NUM_CLASSES[3], NUM_CLASSES[2],
              NUM_CLASSES[1], NUM_CLASSES[0]]      # [2, 4, 8, 16, 32]
HEAD_OFFSETS = [0, 2, 6, 14, 30]
TOTAL_HEADS = sum(HEAD_SIZES)                      # 62
NPAD = 128                                         # lane-dense output width
NLL_LANE = 64                                      # spare lane carrying per-sample CE
FP = 128                                           # padded (feature + bias-carrier) width
TB = 8                                             # batch tile (grid over batch)


# ----------------------------------------------------------------------------
# Fused kernel: backbone stand-in + 5 classifier heads + softmaxes + CE.
# ----------------------------------------------------------------------------
def fused_forward_kernel(x_ref, wp_ref, wc_ref, tgt_ref, out_ref):
    # --- backbone stand-in (features_2): GAP + Linear + ReLU -----------------
    # TODO(synk): the real `model` is an externally injected HAFrame WideResNet
    #             backbone; a deterministic GAP + Linear + ReLU head stands in.
    # x_ref : (TB, KP)  bf16  flattened input + ones-carrier column (bias)
    # wp_ref: (KP, FP)  bf16  GAP-folded projection; row K = [bp, 1, 0...]
    # wc_ref: (FP,128)  bf16  row-normalized head weights^T; row F = biases
    feat = jnp.dot(x_ref[...], wp_ref[...], preferred_element_type=jnp.float32)
    feat = jnp.maximum(feat, 0.0)                          # ReLU; carrier col: relu(1)=1

    # --- all 5 heads with ONE matmul (bias picked up via the carrier row) ----
    logits = jnp.dot(feat.astype(jnp.bfloat16), wc_ref[...],
                     preferred_element_type=jnp.float32)   # (TB, 128); lanes>=62 are 0

    tb = logits.shape[0]
    col = jax.lax.broadcasted_iota(jnp.int32, (tb, NPAD), 1)
    neg = jnp.float32(-1e30)                               # max sentinel only (never exp'd)

    # per-head maxes scattered into a per-lane vector -> single exp pass
    m_lanes = jnp.zeros_like(logits)
    masks, m_list = [], []
    for off, n in zip(HEAD_OFFSETS, HEAD_SIZES):           # static Python loop (5 heads)
        mask = (col >= off) & (col < off + n)
        masks.append(mask)
        m = jnp.max(jnp.where(mask, logits, neg), axis=1, keepdims=True)
        m_list.append(m)
        m_lanes = jnp.where(mask, m, m_lanes)

    e = jnp.exp(logits - m_lanes)                          # ONE EUP pass over (TB,128)

    # per-head exact denominators; approx reciprocal (+1 Newton) only for probs
    r_lanes = jnp.zeros_like(logits)
    s_list = []
    for mask in masks:
        s = jnp.sum(jnp.where(mask, e, 0.0), axis=1, keepdims=True)   # exact sum
        s_list.append(s)
        r = pl.reciprocal(s, approx=True)                  # EUP vrcp
        r = r * (2.0 - s * r)                              # one Newton step -> near-exact
        r_lanes = jnp.where(mask, r, r_lanes)

    probs = e * r_lanes                                    # lanes >= 62: r_lanes==0 -> 0

    # --- cross-entropy on classifier_5 (exact log path, no full log-softmax) -
    m5, s5 = m_list[-1], s_list[-1]
    tgt_col = tgt_ref[...] + HEAD_OFFSETS[-1]              # (TB,1) int32
    onehot = (col == tgt_col).astype(jnp.float32)
    tgt_logit = jnp.sum(onehot * logits, axis=1, keepdims=True)       # (TB,1)
    nll = (m5 + jnp.log(s5)) - tgt_logit                   # per-sample -log p(target)

    # single lane-dense store: 62 softmax lanes + per-sample NLL in NLL_LANE
    out_ref[...] = probs + jnp.where(col == NLL_LANE, nll, 0.0)


# ----------------------------------------------------------------------------
# wrapper: parameter packing + pallas_call
# ----------------------------------------------------------------------------
@jax.jit
def hafeat_forward(x_nchw, wp, bp, weights, biases, targets):
    B, C, H, W = x_nchw.shape
    HW = H * W
    K = C * HW
    KP = ((K + 1 + 127) // 128) * 128                      # lane-aligned slab width

    # x slab: flattened activations + ones-carrier column (carries bp through
    # the first matmul); GAP's 1/HW is folded into wp below.  bf16 MXU operands.
    x_flat = x_nchw.reshape(B, K)
    x_slab = (jnp.zeros((B, KP), jnp.float32)
              .at[:, :K].set(x_flat)
              .at[:, K].set(1.0)
              .astype(jnp.bfloat16))

    wp_rep = jnp.repeat(wp, HW, axis=0) * (1.0 / HW)       # (K, F) GAP-folded projection
    wp_slab = (jnp.zeros((KP, FP), jnp.float32)
               .at[:K, :FEATURE_SIZE].set(wp_rep)
               .at[K, :FEATURE_SIZE].set(bp.reshape(-1))   # bias row
               .at[K, FEATURE_SIZE].set(1.0)               # carrier for the head biases
               .astype(jnp.bfloat16))

    # F.normalize(w, p=2, dim=1) for all heads at once; transpose + zero-pad to a
    # single (FP, 128) slab whose row FEATURE_SIZE holds the concatenated biases.
    # w_norm (f32) is shared with the weight-consistency glue (2nd normalize in
    # the module is idempotent).
    w_all = jnp.concatenate(weights, axis=0)               # (62, F)
    w_norm = w_all / jnp.maximum(
        jnp.linalg.norm(w_all, axis=1, keepdims=True), 1e-12)
    wc_slab = (jnp.zeros((FP, NPAD), jnp.float32)
               .at[:FEATURE_SIZE, :TOTAL_HEADS].set(w_norm.T)
               .at[FEATURE_SIZE, :TOTAL_HEADS].set(jnp.concatenate(biases))
               .astype(jnp.bfloat16))

    tgt = targets.astype(jnp.int32).reshape(B, 1)

    assert B % TB == 0, "batch must be a multiple of the batch tile"
    grid = (B // TB,)

    in_bytes = x_slab.size * 2 + wp_slab.size * 2 + wc_slab.size * 2 + tgt.size * 4
    out_bytes = B * NPAD * 4
    cost = pl.CostEstimate(
        flops=2 * B * KP * FP + 2 * B * FP * NPAD,
        transcendentals=B * NPAD + 8 * B,
        bytes_accessed=in_bytes + out_bytes)

    out = pl.pallas_call(
        fused_forward_kernel,
        grid=grid,
        in_specs=[pl.BlockSpec((TB, KP), lambda i: (i, 0)),
                  pl.BlockSpec((KP, FP), lambda i: (0, 0)),
                  pl.BlockSpec((FP, NPAD), lambda i: (0, 0)),
                  pl.BlockSpec((TB, 1), lambda i: (i, 0))],
        out_specs=pl.BlockSpec((TB, NPAD), lambda i: (i, 0)),
        out_shape=jax.ShapeDtypeStruct((B, NPAD), jnp.float32),
        compiler_params=pltpu.CompilerParams(
            dimension_semantics=("parallel",)),            # v7x: shard batch over both TCs
        cost_estimate=cost,
    )(x_slab, wp_slab, wc_slab, tgt)

    head_probs = [out[:, o:o + n] for o, n in zip(HEAD_OFFSETS, HEAD_SIZES)]
    ce_loss = jnp.mean(out[:, NLL_LANE])
    return head_probs, ce_loss, w_norm


# ----------------------------------------------------------------------------
# plain-JAX glue: hierarchy maps, accuracies, weight consistency, p_hat sums
# ----------------------------------------------------------------------------
def l2_normalize(w, eps=1e-12):
    return w / jnp.maximum(jnp.linalg.norm(w, axis=1, keepdims=True), eps)


def top1_accuracy(probs, tgt):
    pred = jnp.argmax(probs, axis=1)
    return jnp.mean((pred == tgt).astype(jnp.float32)) * 100.0


def weight_consistency(coarse_wn, fine_wn, branching):
    """mean cosine sim between coarse rows and (normalized) sums of child rows."""
    n_coarse, Fdim = coarse_wn.shape
    hat = fine_wn.reshape(n_coarse, branching, Fdim).sum(axis=1)
    hat = l2_normalize(hat)
    cos = jnp.sum(coarse_wn * hat, axis=1) / jnp.maximum(
        jnp.linalg.norm(coarse_wn, axis=1) * jnp.linalg.norm(hat, axis=1), 1e-8)
    return jnp.mean(cos)


def child_sum_probs(fine_probs, n_coarse, branching):
    B = fine_probs.shape[0]
    return fine_probs.reshape(B, n_coarse, branching).sum(axis=2)


# ----------------------------------------------------------------------------
# main
# ----------------------------------------------------------------------------
if __name__ == "__main__":
    key = jax.random.PRNGKey(0)
    B, C, H, W = 8, 4, 16, 16

    k = jax.random.split(key, 16)
    x = jax.random.normal(k[0], (B, C, H, W), dtype=jnp.float32)
    targets = jax.random.randint(k[1], (B,), 0, NUM_CLASSES[0])

    # stand-in backbone params (GAP + Linear(C -> feature_size) + ReLU)
    wp = jax.random.normal(k[2], (C, FEATURE_SIZE), dtype=jnp.float32) * 0.2
    bp = jax.random.normal(k[3], (1, FEATURE_SIZE), dtype=jnp.float32) * 0.1

    # classifier_1..5 = Linear(feature_size, num_classes[4..0])  (coarse -> fine)
    weights, biases = [], []
    for i, n in enumerate(HEAD_SIZES):
        bound = 1.0 / float(FEATURE_SIZE) ** 0.5
        weights.append(jax.random.uniform(k[4 + 2 * i], (n, FEATURE_SIZE),
                                          minval=-bound, maxval=bound,
                                          dtype=jnp.float32))
        biases.append(jax.random.uniform(k[5 + 2 * i], (n,),
                                         minval=-bound, maxval=bound,
                                         dtype=jnp.float32))

    # ---- fused forward (single Pallas kernel) ----
    head_probs, ce_loss, w_norm = hafeat_forward(x, wp, bp, weights, biases, targets)
    l1_out, l2_out, l3_out, l4_out, l5_out = head_probs

    # get_targets(targets): parent lookup (contiguous binary hierarchy assumed)
    # TODO(synk): the real l1_to_l2 .. l4_to_l5 maps are external; children
    #             (2k, 2k+1) -> parent k is used here.
    l4_t = targets // 2
    l3_t = targets // 4
    l2_t = targets // 8
    l1_t = targets // 16

    acc_list = [top1_accuracy(l1_out, l1_t), top1_accuracy(l2_out, l2_t),
                top1_accuracy(l3_out, l3_t), top1_accuracy(l4_out, l4_t),
                top1_accuracy(l5_out, targets)]

    # weight-consistency cosine terms on the (already) normalized weights
    wn = [w_norm[o:o + n] for o, n in zip(HEAD_OFFSETS, HEAD_SIZES)]
    l2_weight_4_5 = weight_consistency(wn[3], wn[4], 2)
    l2_weight_3_4 = weight_consistency(wn[2], wn[3], 2)
    l2_weight_2_3 = weight_consistency(wn[1], wn[2], 2)
    l2_weight_1_2 = weight_consistency(wn[0], wn[1], 2)
    l2_weight_loss = l2_weight_1_2 + l2_weight_2_3 + l2_weight_3_4 + l2_weight_4_5

    # p_hat aggregations (children probability sums) used by the JSD sim loss
    p_hat_l5 = child_sum_probs(l5_out, NUM_CLASSES[1], 2)
    p_hat_l4 = child_sum_probs(l4_out, NUM_CLASSES[2], 2)
    p_hat_l3 = child_sum_probs(l3_out, NUM_CLASSES[3], 2)
    p_hat_l2 = child_sum_probs(l2_out, NUM_CLASSES[4], 2)

    # TODO(synk): JSDSimilarLoss, JSDDissimilarLoss and create_dissimilar_pairs
    #             are external helpers without provided definitions; terms = 0.
    jsd_loss = jnp.float32(0.0)
    dissim_loss = jnp.float32(0.0)

    total_loss = ce_loss + jsd_loss - l2_weight_loss + dissim_loss

    jax.block_until_ready((l5_out, total_loss, acc_list,
                           p_hat_l5, p_hat_l4, p_hat_l3, p_hat_l2))

    # ---- sanity checks ----
    for p in head_probs:                                   # each softmax row sums to 1
        assert jnp.allclose(jnp.sum(p, axis=1), 1.0, atol=1e-4), "softmax rows"

    # module-faithful f32 reference (tolerances account for the bf16 MXU operands)
    pooled = jnp.mean(x.reshape(B, C, H * W), axis=2)
    feat_ref = jnp.maximum(pooled @ wp + bp.reshape(1, -1), 0.0)
    w_all_ref = jnp.concatenate(weights, axis=0)
    w_norm_ref = w_all_ref / jnp.linalg.norm(w_all_ref, axis=1, keepdims=True)
    logits_ref = feat_ref @ w_norm_ref.T + jnp.concatenate(biases)
    for h, (o, n) in enumerate(zip(HEAD_OFFSETS, HEAD_SIZES)):
        p_ref = jax.nn.softmax(logits_ref[:, o:o + n], axis=1)
        assert jnp.allclose(head_probs[h], p_ref, atol=5e-3), f"head {h} probs"

    logits5_ref = logits_ref[:, HEAD_OFFSETS[-1]:]
    lse = jax.scipy.special.logsumexp(logits5_ref, axis=1)
    ce_ref_val = -jnp.mean(logits5_ref[jnp.arange(B), targets] - lse)
    assert jnp.allclose(ce_loss, ce_ref_val, atol=1e-2), "cross-entropy"

    print("KERNEL_OK")
</pallas_src>

<mosaic_0001>
module attributes {stable_mosaic.version = 11 : i64} {
  func.func @fused_forward_kernel(%arg0: i32, %arg1: memref<8x1152xbf16, #tpu.memory_space<vmem>>, %arg2: memref<1152x128xbf16, #tpu.memory_space<vmem>>, %arg3: memref<128x128xbf16, #tpu.memory_space<vmem>>, %arg4: memref<8x1xi32, #tpu.memory_space<vmem>>, %arg5: memref<8x128xf32, #tpu.memory_space<vmem>>) attributes {dimension_semantics = [#tpu.dimension_semantics<parallel>], iteration_bounds = array<i64: 1>, scalar_prefetch = 0 : i64, scratch_operands = 0 : i64, tpu.core_type = #tpu.core_type<tc>, window_params = [{transform_indices = @transform_0, window_bounds = array<i64: 8, 1152>}, {pipeline_mode = #tpu.pipeline_mode<synchronous>, transform_indices = @transform_1, window_bounds = array<i64: 1152, 128>}, {pipeline_mode = #tpu.pipeline_mode<synchronous>, transform_indices = @transform_2, window_bounds = array<i64: 128, 128>}, {transform_indices = @transform_3, window_bounds = array<i64: 8, 1>}, {transform_indices = @transform_4, window_bounds = array<i64: 8, 128>}]} {
    %c0 = arith.constant 0 : index
    %c0_0 = arith.constant 0 : index
    %0 = vector.load %arg1[%c0, %c0_0] : memref<8x1152xbf16, #tpu.memory_space<vmem>>, vector<8x1152xbf16>
    %c0_1 = arith.constant 0 : index
    %c0_2 = arith.constant 0 : index
    %1 = vector.load %arg2[%c0_1, %c0_2] : memref<1152x128xbf16, #tpu.memory_space<vmem>>, vector<1152x128xbf16>
    %cst = arith.constant dense<0.000000e+00> : vector<8x128xf32>
    %2 = tpu.matmul %0, %1, %cst {dimension_numbers = #tpu.dot_dimension_numbers<[1], [0], [0], [1], [0, 0, 1, 1], [], []>} : vector<8x1152xbf16>, vector<1152x128xbf16>, vector<8x128xf32> -> vector<8x128xf32>
    %cst_3 = arith.constant 0.000000e+00 : f32
    %3 = vector.broadcast %cst_3 : f32 to vector<8x128xf32>
    %4 = arith.maximumf %2, %3 : vector<8x128xf32>
    %5 = arith.truncf %4 : vector<8x128xf32> to vector<8x128xbf16>
    %c0_4 = arith.constant 0 : index
    %c0_5 = arith.constant 0 : index
    %6 = vector.load %arg3[%c0_4, %c0_5] : memref<128x128xbf16, #tpu.memory_space<vmem>>, vector<128x128xbf16>
    %cst_6 = arith.constant dense<0.000000e+00> : vector<8x128xf32>
    %7 = tpu.matmul %5, %6, %cst_6 {dimension_numbers = #tpu.dot_dimension_numbers<[1], [0], [0], [1], [0, 0, 1, 1], [], []>} : vector<8x128xbf16>, vector<128x128xbf16>, vector<8x128xf32> -> vector<8x128xf32>
    %8 = tpu.iota {dimensions = array<i32: 1>} : vector<8x128xi32>
    %cst_7 = arith.constant 0.000000e+00 : f32
    %9 = vector.broadcast %cst_7 : f32 to vector<8x128xf32>
    %c0_i32 = arith.constant 0 : i32
    %10 = vector.broadcast %c0_i32 : i32 to vector<8x128xi32>
    %11 = arith.cmpi sge, %8, %10 : vector<8x128xi32>
    %c2_i32 = arith.constant 2 : i32
    %12 = vector.broadcast %c2_i32 : i32 to vector<8x128xi32>
    %13 = arith.cmpi slt, %8, %12 : vector<8x128xi32>
    %14 = arith.andi %11, %13 : vector<8x128xi1>
    %cst_8 = arith.constant -1.000000e+30 : f32
    %15 = vector.broadcast %cst_8 : f32 to vector<8x128xf32>
    %16 = arith.select %14, %7, %15 : vector<8x128xi1>, vector<8x128xf32>
    %cst_9 = arith.constant dense<0xFF800000> : vector<8xf32>
    %17 = vector.multi_reduction <maximumf>, %16, %cst_9 [1] : vector<8x128xf32> to vector<8xf32>
    %18 = vector.shape_cast %17 : vector<8xf32> to vector<8x1xf32>
    %19 = vector.shape_cast %18 : vector<8x1xf32> to vector<8x1xf32>
    %20 = vector.broadcast %19 : vector<8x1xf32> to vector<8x128xf32>
    %21 = arith.select %14, %20, %9 : vector<8x128xi1>, vector<8x128xf32>
    %c2_i32_10 = arith.constant 2 : i32
    %22 = vector.broadcast %c2_i32_10 : i32 to vector<8x128xi32>
    %23 = arith.cmpi sge, %8, %22 : vector<8x128xi32>
    %c6_i32 = arith.constant 6 : i32
    %24 = vector.broadcast %c6_i32 : i32 to vector<8x128xi32>
    %25 = arith.cmpi slt, %8, %24 : vector<8x128xi32>
    %26 = arith.andi %23, %25 : vector<8x128xi1>
    %cst_11 = arith.constant -1.000000e+30 : f32
    %27 = vector.broadcast %cst_11 : f32 to vector<8x128xf32>
    %28 = arith.select %26, %7, %27 : vector<8x128xi1>, vector<8x128xf32>
    %cst_12 = arith.constant dense<0xFF800000> : vector<8xf32>
    %29 = vector.multi_reduction <maximumf>, %28, %cst_12 [1] : vector<8x128xf32> to vector<8xf32>
    %30 = vector.shape_cast %29 : vector<8xf32> to vector<8x1xf32>
    %31 = vector.shape_cast %30 : vector<8x1xf32> to vector<8x1xf32>
    %32 = vector.broadcast %31 : vector<8x1xf32> to vector<8x128xf32>
    %33 = arith.select %26, %32, %21 : vector<8x128xi1>, vector<8x128xf32>
    %c6_i32_13 = arith.constant 6 : i32
    %34 = vector.broadcast %c6_i32_13 : i32 to vector<8x128xi32>
    %35 = arith.cmpi sge, %8, %34 : vector<8x128xi32>
    %c14_i32 = arith.constant 14 : i32
    %36 = vector.broadcast %c14_i32 : i32 to vector<8x128xi32>
    %37 = arith.cmpi slt, %8, %36 : vector<8x128xi32>
    %38 = arith.andi %35, %37 : vector<8x128xi1>
    %cst_14 = arith.constant -1.000000e+30 : f32
    %39 = vector.broadcast %cst_14 : f32 to vector<8x128xf32>
    %40 = arith.select %38, %7, %39 : vector<8x128xi1>, vector<8x128xf32>
    %cst_15 = arith.constant dense<0xFF800000> : vector<8xf32>
    %41 = vector.multi_reduction <maximumf>, %40, %cst_15 [1] : vector<8x128xf32> to vector<8xf32>
    %42 = vector.shape_cast %41 : vector<8xf32> to vector<8x1xf32>
    %43 = vector.shape_cast %42 : vector<8x1xf32> to vector<8x1xf32>
    %44 = vector.broadcast %43 : vector<8x1xf32> to vector<8x128xf32>
    %45 = arith.select %38, %44, %33 : vector<8x128xi1>, vector<8x128xf32>
    %c14_i32_16 = arith.constant 14 : i32
    %46 = vector.broadcast %c14_i32_16 : i32 to vector<8x128xi32>
    %47 = arith.cmpi sge, %8, %46 : vector<8x128xi32>
    %c30_i32 = arith.constant 30 : i32
    %48 = vector.broadcast %c30_i32 : i32 to vector<8x128xi32>
    %49 = arith.cmpi slt, %8, %48 : vector<8x128xi32>
    %50 = arith.andi %47, %49 : vector<8x128xi1>
    %cst_17 = arith.constant -1.000000e+30 : f32
    %51 = vector.broadcast %cst_17 : f32 to vector<8x128xf32>
    %52 = arith.select %50, %7, %51 : vector<8x128xi1>, vector<8x128xf32>
    %cst_18 = arith.constant dense<0xFF800000> : vector<8xf32>
    %53 = vector.multi_reduction <maximumf>, %52, %cst_18 [1] : vector<8x128xf32> to vector<8xf32>
    %54 = vector.shape_cast %53 : vector<8xf32> to vector<8x1xf32>
    %55 = vector.shape_cast %54 : vector<8x1xf32> to vector<8x1xf32>
    %56 = vector.broadcast %55 : vector<8x1xf32> to vector<8x128xf32>
    %57 = arith.select %50, %56, %45 : vector<8x128xi1>, vector<8x128xf32>
    %c30_i32_19 = arith.constant 30 : i32
    %58 = vector.broadcast %c30_i32_19 : i32 to vector<8x128xi32>
    %59 = arith.cmpi sge, %8, %58 : vector<8x128xi32>
    %c62_i32 = arith.constant 62 : i32
    %60 = vector.broadcast %c62_i32 : i32 to vector<8x128xi32>
    %61 = arith.cmpi slt, %8, %60 : vector<8x128xi32>
    %62 = arith.andi %59, %61 : vector<8x128xi1>
    %cst_20 = arith.constant -1.000000e+30 : f32
    %63 = vector.broadcast %cst_20 : f32 to vector<8x128xf32>
    %64 = arith.select %62, %7, %63 : vector<8x128xi1>, vector<8x128xf32>
    %cst_21 = arith.constant dense<0xFF800000> : vector<8xf32>
    %65 = vector.multi_reduction <maximumf>, %64, %cst_21 [1] : vector<8x128xf32> to vector<8xf32>
    %66 = vector.shape_cast %65 : vector<8xf32> to vector<8x1xf32>
    %67 = vector.shape_cast %66 : vector<8x1xf32> to vector<8x1xf32>
    %68 = vector.broadcast %67 : vector<8x1xf32> to vector<8x128xf32>
    %69 = arith.select %62, %68, %57 : vector<8x128xi1>, vector<8x128xf32>
    %70 = arith.subf %7, %69 : vector<8x128xf32>
    %71 = math.exp %70 : vector<8x128xf32>
    %cst_22 = arith.constant 0.000000e+00 : f32
    %72 = vector.broadcast %cst_22 : f32 to vector<8x128xf32>
    %cst_23 = arith.constant 0.000000e+00 : f32
    %73 = vector.broadcast %cst_23 : f32 to vector<8x128xf32>
    %74 = arith.select %14, %71, %73 : vector<8x128xi1>, vector<8x128xf32>
    %cst_24 = arith.constant dense<0.000000e+00> : vector<8xf32>
    %75 = vector.multi_reduction <add>, %74, %cst_24 [1] : vector<8x128xf32> to vector<8xf32>
    %76 = vector.shape_cast %75 : vector<8xf32> to vector<8x1xf32>
    %77 = tpu.reciprocal %76 {approx = true} : vector<8x1xf32> -> vector<8x1xf32>
    %78 = arith.mulf %76, %77 : vector<8x1xf32>
    %cst_25 = arith.constant 2.000000e+00 : f32
    %79 = vector.broadcast %cst_25 : f32 to vector<8x1xf32>
    %80 = arith.subf %79, %78 : vector<8x1xf32>
    %81 = arith.mulf %77, %80 : vector<8x1xf32>
    %82 = vector.shape_cast %81 : vector<8x1xf32> to vector<8x1xf32>
    %83 = vector.broadcast %82 : vector<8x1xf32> to vector<8x128xf32>
    %84 = arith.select %14, %83, %72 : vector<8x128xi1>, vector<8x128xf32>
    %cst_26 = arith.constant 0.000000e+00 : f32
    %85 = vector.broadcast %cst_26 : f32 to vector<8x128xf32>
    %86 = arith.select %26, %71, %85 : vector<8x128xi1>, vector<8x128xf32>
    %cst_27 = arith.constant dense<0.000000e+00> : vector<8xf32>
    %87 = vector.multi_reduction <add>, %86, %cst_27 [1] : vector<8x128xf32> to vector<8xf32>
    %88 = vector.shape_cast %87 : vector<8xf32> to vector<8x1xf32>
    %89 = tpu.reciprocal %88 {approx = true} : vector<8x1xf32> -> vector<8x1xf32>
    %90 = arith.mulf %88, %89 : vector<8x1xf32>
    %cst_28 = arith.constant 2.000000e+00 : f32
    %91 = vector.broadcast %cst_28 : f32 to vector<8x1xf32>
    %92 = arith.subf %91, %90 : vector<8x1xf32>
    %93 = arith.mulf %89, %92 : vector<8x1xf32>
    %94 = vector.shape_cast %93 : vector<8x1xf32> to vector<8x1xf32>
    %95 = vector.broadcast %94 : vector<8x1xf32> to vector<8x128xf32>
    %96 = arith.select %26, %95, %84 : vector<8x128xi1>, vector<8x128xf32>
    %cst_29 = arith.constant 0.000000e+00 : f32
    %97 = vector.broadcast %cst_29 : f32 to vector<8x128xf32>
    %98 = arith.select %38, %71, %97 : vector<8x128xi1>, vector<8x128xf32>
    %cst_30 = arith.constant dense<0.000000e+00> : vector<8xf32>
    %99 = vector.multi_reduction <add>, %98, %cst_30 [1] : vector<8x128xf32> to vector<8xf32>
    %100 = vector.shape_cast %99 : vector<8xf32> to vector<8x1xf32>
    %101 = tpu.reciprocal %100 {approx = true} : vector<8x1xf32> -> vector<8x1xf32>
    %102 = arith.mulf %100, %101 : vector<8x1xf32>
    %cst_31 = arith.constant 2.000000e+00 : f32
    %103 = vector.broadcast %cst_31 : f32 to vector<8x1xf32>
    %104 = arith.subf %103, %102 : vector<8x1xf32>
    %105 = arith.mulf %101, %104 : vector<8x1xf32>
    %106 = vector.shape_cast %105 : vector<8x1xf32> to vector<8x1xf32>
    %107 = vector.broadcast %106 : vector<8x1xf32> to vector<8x128xf32>
    %108 = arith.select %38, %107, %96 : vector<8x128xi1>, vector<8x128xf32>
    %cst_32 = arith.constant 0.000000e+00 : f32
    %109 = vector.broadcast %cst_32 : f32 to vector<8x128xf32>
    %110 = arith.select %50, %71, %109 : vector<8x128xi1>, vector<8x128xf32>
    %cst_33 = arith.constant dense<0.000000e+00> : vector<8xf32>
    %111 = vector.multi_reduction <add>, %110, %cst_33 [1] : vector<8x128xf32> to vector<8xf32>
    %112 = vector.shape_cast %111 : vector<8xf32> to vector<8x1xf32>
    %113 = tpu.reciprocal %112 {approx = true} : vector<8x1xf32> -> vector<8x1xf32>
    %114 = arith.mulf %112, %113 : vector<8x1xf32>
    %cst_34 = arith.constant 2.000000e+00 : f32
    %115 = vector.broadcast %cst_34 : f32 to vector<8x1xf32>
    %116 = arith.subf %115, %114 : vector<8x1xf32>
    %117 = arith.mulf %113, %116 : vector<8x1xf32>
    %118 = vector.shape_cast %117 : vector<8x1xf32> to vector<8x1xf32>
    %119 = vector.broadcast %118 : vector<8x1xf32> to vector<8x128xf32>
    %120 = arith.select %50, %119, %108 : vector<8x128xi1>, vector<8x128xf32>
    %cst_35 = arith.constant 0.000000e+00 : f32
    %121 = vector.broadcast %cst_35 : f32 to vector<8x128xf32>
    %122 = arith.select %62, %71, %121 : vector<8x128xi1>, vector<8x128xf32>
    %cst_36 = arith.constant dense<0.000000e+00> : vector<8xf32>
    %123 = vector.multi_reduction <add>, %122, %cst_36 [1] : vector<8x128xf32> to vector<8xf32>
    %124 = vector.shape_cast %123 : vector<8xf32> to vector<8x1xf32>
    %125 = tpu.reciprocal %124 {approx = true} : vector<8x1xf32> -> vector<8x1xf32>
    %126 = arith.mulf %124, %125 : vector<8x1xf32>
    %cst_37 = arith.constant 2.000000e+00 : f32
    %127 = vector.broadcast %cst_37 : f32 to vector<8x1xf32>
    %128 = arith.subf %127, %126 : vector<8x1xf32>
    %129 = arith.mulf %125, %128 : vector<8x1xf32>
    %130 = vector.shape_cast %129 : vector<8x1xf32> to vector<8x1xf32>
    %131 = vector.broadcast %130 : vector<8x1xf32> to vector<8x128xf32>
    %132 = arith.select %62, %131, %120 : vector<8x128xi1>, vector<8x128xf32>
    %133 = arith.mulf %71, %132 : vector<8x128xf32>
    %c0_38 = arith.constant 0 : index
    %c0_39 = arith.constant 0 : index
    %134 = vector.load %arg4[%c0_38, %c0_39] : memref<8x1xi32, #tpu.memory_space<vmem>>, vector<8x1xi32>
    %c30_i32_40 = arith.constant 30 : i32
    %135 = vector.broadcast %c30_i32_40 : i32 to vector<8x1xi32>
    %136 = arith.addi %134, %135 : vector<8x1xi32>
    %137 = vector.broadcast %136 : vector<8x1xi32> to vector<8x128xi32>
    %138 = arith.cmpi eq, %8, %137 : vector<8x128xi32>
    %139 = arith.extui %138 : vector<8x128xi1> to vector<8x128xi32>
    %140 = arith.sitofp %139 : vector<8x128xi32> to vector<8x128xf32>
    %141 = arith.mulf %140, %7 : vector<8x128xf32>
    %cst_41 = arith.constant dense<0.000000e+00> : vector<8xf32>
    %142 = vector.multi_reduction <add>, %141, %cst_41 [1] : vector<8x128xf32> to vector<8xf32>
    %143 = vector.shape_cast %142 : vector<8xf32> to vector<8x1xf32>
    %144 = math.log %124 : vector<8x1xf32>
    %145 = arith.addf %66, %144 : vector<8x1xf32>
    %146 = arith.subf %145, %143 : vector<8x1xf32>
    %c64_i32 = arith.constant 64 : i32
    %147 = vector.broadcast %c64_i32 : i32 to vector<8x128xi32>
    %148 = arith.cmpi eq, %8, %147 : vector<8x128xi32>
    %cst_42 = arith.constant 0.000000e+00 : f32
    %149 = vector.shape_cast %146 : vector<8x1xf32> to vector<8x1xf32>
    %150 = vector.broadcast %149 : vector<8x1xf32> to vector<8x128xf32>
    %151 = vector.broadcast %cst_42 : f32 to vector<8x128xf32>
    %152 = arith.select %148, %150, %151 : vector<8x128xi1>, vector<8x128xf32>
    %153 = arith.addf %133, %152 : vector<8x128xf32>
    %c0_43 = arith.constant 0 : index
    %c0_44 = arith.constant 0 : index
    %154 = vector.load %arg5[%c0_43, %c0_44] : memref<8x128xf32, #tpu.memory_space<vmem>>, vector<8x128xf32>
    tpu.vector_store %arg5[%c0_43, %c0_44], %153 {strides = array<i32>} : memref<8x128xf32, #tpu.memory_space<vmem>>, vector<8x128xf32>,
    return
  }
  func.func @transform_0(%arg0: i32) -> (i32, i32) {
    %c0_i32 = arith.constant 0 : i32
    %c0_i32_0 = arith.constant 0 : i32
    return %arg0, %c0_i32 : i32, i32
  }
  func.func @transform_1(%arg0: i32) -> (i32, i32) {
    %c0_i32 = arith.constant 0 : i32
    %c0_i32_0 = arith.constant 0 : i32
    %c0_i32_1 = arith.constant 0 : i32
    return %c0_i32, %c0_i32_0 : i32, i32
  }
  func.func @transform_2(%arg0: i32) -> (i32, i32) {
    %c0_i32 = arith.constant 0 : i32
    %c0_i32_0 = arith.constant 0 : i32
    %c0_i32_1 = arith.constant 0 : i32
    return %c0_i32, %c0_i32_0 : i32, i32
  }
  func.func @transform_3(%arg0: i32) -> (i32, i32) {
    %c0_i32 = arith.constant 0 : i32
    %c0_i32_0 = arith.constant 0 : i32
    return %arg0, %c0_i32 : i32, i32
  }
  func.func @transform_4(%arg0: i32) -> (i32, i32) {
    %c0_i32 = arith.constant 0 : i32
    %c0_i32_0 = arith.constant 0 : i32
    return %arg0, %c0_i32 : i32, i32
  }
}

</mosaic_0001>

<llo_original>
// kernel: hafeat_forward.1
$region0: #{hafeat_forward.1}
  #allocation0 [shape = 'u32[]', space=smem, size = 0x4, offset = 0x4, fixed_abs, tag = 'smem constant byte address 0x4 - core index']
  #allocation1 [shape = 'u32[144,128]{1,0:T(1,128)}', space=vmem, size = 0x12000, scoped, tag = 'internal scratch']
  %s0 = inlined_call_operand.vmem [shape: bf16[8,1152], index: 0, kind: input, shape index: {}]
  %s1 = inlined_call_operand.vmem [shape: bf16[1152,128], index: 1, kind: input, shape index: {}]
  %s2 = inlined_call_operand.vmem [shape: bf16[128,128], index: 2, kind: input, shape index: {}]
  %s3 = inlined_call_operand.vmem [shape: s32[8,1], index: 3, kind: input, shape index: {}]
  %s4 = inlined_call_operand.vmem [shape: f32[8,128], index: 4, kind: output, shape index: {}]
  %s5 = sld [smem:[#allocation0]]
  $region26: #{hafeat_forward.1} parent=0
    _
  %s7 = ssub.s32 1, %s5
  %s8 = scalar_select 0, %s7, %s5
  // Predicated region
  $region2: #{hafeat_forward.1} parent=0 // pred_check
    _
  $region3: #{hafeat_forward.1} parent=0 // pred_check_branch
    %10 = sbr.rel (0) target = $region5
  $region4: #{hafeat_forward.1} parent=0 // pred_region
    _
  $region5: #{hafeat_forward.1} parent=0 // pred_fallthru
    _
  // Predicated region
  $region6: #{hafeat_forward.1} parent=0 // pred_check
    _
  $region7: #{hafeat_forward.1} parent=0 // pred_check_branch
    %12 = sbr.rel (0) target = $region9
  $region8: #{hafeat_forward.1} parent=0 // pred_region
    _
  $region9: #{hafeat_forward.1} parent=0 // pred_fallthru
    _
  // Predicated region
  $region10: #{hafeat_forward.1} parent=0 // pred_check
    _
  $region11: #{hafeat_forward.1} parent=0 // pred_check_branch
    %14 = sbr.rel (0) target = $region13
  $region12: #{hafeat_forward.1} parent=0 // pred_region
    _
  $region13: #{hafeat_forward.1} parent=0 // pred_fallthru
    _
  // Predicated region
  $region14: #{hafeat_forward.1} parent=0 // pred_check
    _
  $region15: #{hafeat_forward.1} parent=0 // pred_check_branch
    %16 = sbr.rel (0) target = $region17
  $region16: #{hafeat_forward.1} parent=0 // pred_region
    _
  $region17: #{hafeat_forward.1} parent=0 // pred_fallthru
    _
  %v18 = vld [vmem:[%s0] sm:$0xff]
  %v19 = vld [vmem:[%s0 + $0x8] sm:$0xff]
  %v20 = vld [vmem:[%s0 + $0x10] sm:$0xff]
  %v21 = vld [vmem:[%s0 + $0x18] sm:$0xff]
  %v22 = vld [vmem:[%s0 + $0x20] sm:$0xf]
  %v23 = vld [vmem:[%s1] sm:$0xf]
  %v24 = vld [vmem:[%s1 + $0x4] sm:$0xf]
  %v25 = vld [vmem:[%s1 + $0x8] sm:$0xf]
  %v26 = vld [vmem:[%s1 + $0xc] sm:$0xf]
  %v27 = vld [vmem:[%s1 + $0x10] sm:$0xf]
  %v28 = vld [vmem:[%s1 + $0x14] sm:$0xf]
  %v29 = vld [vmem:[%s1 + $0x18] sm:$0xf]
  %v30 = vld [vmem:[%s1 + $0x1c] sm:$0xf]
  %v31 = vld [vmem:[%s1 + $0x20] sm:$0xf]
  %v32 = vld [vmem:[%s1 + $0x24] sm:$0xf]
  %v33 = vld [vmem:[%s1 + $0x28] sm:$0xf]
  %v34 = vld [vmem:[%s1 + $0x2c] sm:$0xf]
  %v35 = vld [vmem:[%s1 + $0x30] sm:$0xf]
  %v36 = vld [vmem:[%s1 + $0x34] sm:$0xf]
  %v37 = vld [vmem:[%s1 + $0x38] sm:$0xf]
  %v38 = vld [vmem:[%s1 + $0x3c] sm:$0xf]
  %v39 = vld [vmem:[%s1 + $0x40] sm:$0xf]
  %v40 = vld [vmem:[%s1 + $0x44] sm:$0xf]
  %v41 = vld [vmem:[%s1 + $0x48] sm:$0xf]
  %v42 = vld [vmem:[%s1 + $0x4c] sm:$0xf]
  %v43 = vld [vmem:[%s1 + $0x50] sm:$0xf]
  %v44 = vld [vmem:[%s1 + $0x54] sm:$0xf]
  %v45 = vld [vmem:[%s1 + $0x58] sm:$0xf]
  %v46 = vld [vmem:[%s1 + $0x5c] sm:$0xf]
  %v47 = vld [vmem:[%s1 + $0x60] sm:$0xf]
  %v48 = vld [vmem:[%s1 + $0x64] sm:$0xf]
  %v49 = vld [vmem:[%s1 + $0x68] sm:$0xf]
  %v50 = vld [vmem:[%s1 + $0x6c] sm:$0xf]
  %v51 = vld [vmem:[%s1 + $0x70] sm:$0xf]
  %v52 = vld [vmem:[%s1 + $0x74] sm:$0xf]
  %v53 = vld [vmem:[%s1 + $0x78] sm:$0xf]
  %v54 = vld [vmem:[%s1 + $0x7c] sm:$0xf]
  %v55 = vld [vmem:[%s1 + $0x80] sm:$0xf]
  %v56 = vld [vmem:[%s1 + $0x84] sm:$0xf]
  %v57 = vld [vmem:[%s1 + $0x88] sm:$0xf]
  %v58 = vld [vmem:[%s1 + $0x8c] sm:$0xf]
  %v59 = vld [vmem:[%s1 + $0x90] sm:$0xf]
  %v60 = vld [vmem:[%s1 + $0x94] sm:$0xf]
  %v61 = vld [vmem:[%s1 + $0x98] sm:$0xf]
  %v62 = vld [vmem:[%s1 + $0x9c] sm:$0xf]
  %v63 = vld [vmem:[%s1 + $0xa0] sm:$0xf]
  %v64 = vld [vmem:[%s1 + $0xa4] sm:$0xf]
  %v65 = vld [vmem:[%s1 + $0xa8] sm:$0xf]
  %v66 = vld [vmem:[%s1 + $0xac] sm:$0xf]
  %v67 = vld [vmem:[%s1 + $0xb0] sm:$0xf]
  %v68 = vld [vmem:[%s1 + $0xb4] sm:$0xf]
  %v69 = vld [vmem:[%s1 + $0xb8] sm:$0xf]
  %v70 = vld [vmem:[%s1 + $0xbc] sm:$0xf]
  %v71 = vld [vmem:[%s1 + $0xc0] sm:$0xf]
  %v72 = vld [vmem:[%s1 + $0xc4] sm:$0xf]
  %v73 = vld [vmem:[%s1 + $0xc8] sm:$0xf]
  %v74 = vld [vmem:[%s1 + $0xcc] sm:$0xf]
  %v75 = vld [vmem:[%s1 + $0xd0] sm:$0xf]
  %v76 = vld [vmem:[%s1 + $0xd4] sm:$0xf]
  %v77 = vld [vmem:[%s1 + $0xd8] sm:$0xf]
  %v78 = vld [vmem:[%s1 + $0xdc] sm:$0xf]
  %v79 = vld [vmem:[%s1 + $0xe0] sm:$0xf]
  %v80 = vld [vmem:[%s1 + $0xe4] sm:$0xf]
  %v81 = vld [vmem:[%s1 + $0xe8] sm:$0xf]
  %v82 = vld [vmem:[%s1 + $0xec] sm:$0xf]
  %v83 = vld [vmem:[%s1 + $0xf0] sm:$0xf]
  %v84 = vld [vmem:[%s1 + $0xf4] sm:$0xf]
  %v85 = vld [vmem:[%s1 + $0xf8] sm:$0xf]
  %v86 = vld [vmem:[%s1 + $0xfc] sm:$0xf]
  %v87 = vld [vmem:[%s1 + $0x100] sm:$0xf]
  %v88 = vld [vmem:[%s1 + $0x104] sm:$0xf]
  %v89 = vld [vmem:[%s1 + $0x108] sm:$0xf]
  %v90 = vld [vmem:[%s1 + $0x10c] sm:$0xf]
  %v91 = vld [vmem:[%s1 + $0x110] sm:$0xf]
  %v92 = vld [vmem:[%s1 + $0x114] sm:$0xf]
  %v93 = vld [vmem:[%s1 + $0x118] sm:$0xf]
  %v94 = vld [vmem:[%s1 + $0x11c] sm:$0xf]
  %v95 = vld [vmem:[%s1 + $0x120] sm:$0xf]
  %v96 = vld [vmem:[%s1 + $0x124] sm:$0xf]
  %v97 = vld [vmem:[%s1 + $0x128] sm:$0xf]
  %v98 = vld [vmem:[%s1 + $0x12c] sm:$0xf]
  %v99 = vld [vmem:[%s1 + $0x130] sm:$0xf]
  %v100 = vld [vmem:[%s1 + $0x134] sm:$0xf]
  %v101 = vld [vmem:[%s1 + $0x138] sm:$0xf]
  %v102 = vld [vmem:[%s1 + $0x13c] sm:$0xf]
  %v103 = vld [vmem:[%s1 + $0x140] sm:$0xf]
  %v104 = vld [vmem:[%s1 + $0x144] sm:$0xf]
  %v105 = vld [vmem:[%s1 + $0x148] sm:$0xf]
  %v106 = vld [vmem:[%s1 + $0x14c] sm:$0xf]
  %v107 = vld [vmem:[%s1 + $0x150] sm:$0xf]
  %v108 = vld [vmem:[%s1 + $0x154] sm:$0xf]
  %v109 = vld [vmem:[%s1 + $0x158] sm:$0xf]
  %v110 = vld [vmem:[%s1 + $0x15c] sm:$0xf]
  %v111 = vld [vmem:[%s1 + $0x160] sm:$0xf]
  %v112 = vld [vmem:[%s1 + $0x164] sm:$0xf]
  %v113 = vld [vmem:[%s1 + $0x168] sm:$0xf]
  %v114 = vld [vmem:[%s1 + $0x16c] sm:$0xf]
  %v115 = vld [vmem:[%s1 + $0x170] sm:$0xf]
  %v116 = vld [vmem:[%s1 + $0x174] sm:$0xf]
  %v117 = vld [vmem:[%s1 + $0x178] sm:$0xf]
  %v118 = vld [vmem:[%s1 + $0x17c] sm:$0xf]
  %v119 = vld [vmem:[%s1 + $0x180] sm:$0xf]
  %v120 = vld [vmem:[%s1 + $0x184] sm:$0xf]
  %v121 = vld [vmem:[%s1 + $0x188] sm:$0xf]
  %v122 = vld [vmem:[%s1 + $0x18c] sm:$0xf]
  %v123 = vld [vmem:[%s1 + $0x190] sm:$0xf]
  %v124 = vld [vmem:[%s1 + $0x194] sm:$0xf]
  %v125 = vld [vmem:[%s1 + $0x198] sm:$0xf]
  %v126 = vld [vmem:[%s1 + $0x19c] sm:$0xf]
  %v127 = vld [vmem:[%s1 + $0x1a0] sm:$0xf]
  %v128 = vld [vmem:[%s1 + $0x1a4] sm:$0xf]
  %v129 = vld [vmem:[%s1 + $0x1a8] sm:$0xf]
  %v130 = vld [vmem:[%s1 + $0x1ac] sm:$0xf]
  %v131 = vld [vmem:[%s1 + $0x1b0] sm:$0xf]
  %v132 = vld [vmem:[%s1 + $0x1b4] sm:$0xf]
  %v133 = vld [vmem:[%s1 + $0x1b8] sm:$0xf]
  %v134 = vld [vmem:[%s1 + $0x1bc] sm:$0xf]
  %v135 = vld [vmem:[%s1 + $0x1c0] sm:$0xf]
  %v136 = vld [vmem:[%s1 + $0x1c4] sm:$0xf]
  %v137 = vld [vmem:[%s1 + $0x1c8] sm:$0xf]
  %v138 = vld [vmem:[%s1 + $0x1cc] sm:$0xf]
  %v139 = vld [vmem:[%s1 + $0x1d0] sm:$0xf]
  %v140 = vld [vmem:[%s1 + $0x1d4] sm:$0xf]
  %v141 = vld [vmem:[%s1 + $0x1d8] sm:$0xf]
  %v142 = vld [vmem:[%s1 + $0x1dc] sm:$0xf]
  %v143 = vld [vmem:[%s1 + $0x1e0] sm:$0xf]
  %v144 = vld [vmem:[%s1 + $0x1e4] sm:$0xf]
  %v145 = vld [vmem:[%s1 + $0x1e8] sm:$0xf]
  %v146 = vld [vmem:[%s1 + $0x1ec] sm:$0xf]
  %v147 = vld [vmem:[%s1 + $0x1f0] sm:$0xf]
  %v148 = vld [vmem:[%s1 + $0x1f4] sm:$0xf]
  %v149 = vld [vmem:[%s1 + $0x1f8] sm:$0xf]
  %v150 = vld [vmem:[%s1 + $0x1fc] sm:$0xf]
  %v151 = vld [vmem:[%s1 + $0x200] sm:$0xf]
  %v152 = vld [vmem:[%s1 + $0x204] sm:$0xf]
  %v153 = vld [vmem:[%s1 + $0x208] sm:$0xf]
  %v154 = vld [vmem:[%s1 + $0x20c] sm:$0xf]
  %v155 = vld [vmem:[%s1 + $0x210] sm:$0xf]
  %v156 = vld [vmem:[%s1 + $0x214] sm:$0xf]
  %v157 = vld [vmem:[%s1 + $0x218] sm:$0xf]
  %v158 = vld [vmem:[%s1 + $0x21c] sm:$0xf]
  %v159 = vld [vmem:[%s1 + $0x220] sm:$0xf]
  %v160 = vld [vmem:[%s1 + $0x224] sm:$0xf]
  %v161 = vld [vmem:[%s1 + $0x228] sm:$0xf]
  %v162 = vld [vmem:[%s1 + $0x22c] sm:$0xf]
  %v163 = vld [vmem:[%s1 + $0x230] sm:$0xf]
  %v164 = vld [vmem:[%s1 + $0x234] sm:$0xf]
  %v165 = vld [vmem:[%s1 + $0x238] sm:$0xf]
  %v166 = vld [vmem:[%s1 + $0x23c] sm:$0xf]
  %v172 = vunpack.c.l.b16 %v18
  %v173 = vunpack.c.h.b16 %v18
  %v174 = vunpack.c.l.b16 %v19
  %v175 = vunpack.c.h.b16 %v19
  %v176 = vunpack.c.l.b16 %v20
  %v177 = vunpack.c.h.b16 %v20
  %v178 = vunpack.c.l.b16 %v21
  %v179 = vunpack.c.h.b16 %v21
  %v180 = vunpack.c.l.b16 %v22
  %v181 = vpack.c.b16 %v172, %v172
  %v182 = vpack.c.b16 %v173, %v173
  %v183 = vpack.c.b16 %v174, %v174
  %v184 = vpack.c.b16 %v175, %v175
  %v185 = vpack.c.b16 %v176, %v176
  %v186 = vpack.c.b16 %v177, %v177
  %v187 = vpack.c.b16 %v178, %v178
  %v188 = vpack.c.b16 %v179, %v179
  %v189 = vpack.c.b16 %v180, %v180
  %v343 = vunpack.c.l.b16 %v23
  %v344 = vunpack.c.l.b16 %v24
  %v345 = vunpack.c.l.b16 %v25
  %v346 = vunpack.c.l.b16 %v26
  %v347 = vunpack.c.l.b16 %v27
  %v348 = vunpack.c.l.b16 %v28
  %v349 = vunpack.c.l.b16 %v29
  %v350 = vunpack.c.l.b16 %v30
  %v351 = vunpack.c.l.b16 %v31
  %v352 = vunpack.c.l.b16 %v32
  %v353 = vunpack.c.l.b16 %v33
  %v354 = vunpack.c.l.b16 %v34
  %v355 = vunpack.c.l.b16 %v35
  %v356 = vunpack.c.l.b16 %v36
  %v357 = vunpack.c.l.b16 %v37
  %v358 = vunpack.c.l.b16 %v38
  %v359 = vunpack.c.l.b16 %v39
  %v360 = vunpack.c.l.b16 %v40
  %v361 = vunpack.c.l.b16 %v41
  %v362 = vunpack.c.l.b16 %v42
  %v363 = vunpack.c.l.b16 %v43
  %v364 = vunpack.c.l.b16 %v44
  %v365 = vunpack.c.l.b16 %v45
  %v366 = vunpack.c.l.b16 %v46
  %v367 = vunpack.c.l.b16 %v47
  %v368 = vunpack.c.l.b16 %v48
  %v369 = vunpack.c.l.b16 %v49
  %v370 = vunpack.c.l.b16 %v50
  %v371 = vunpack.c.l.b16 %v51
  %v372 = vunpack.c.l.b16 %v52
  %v373 = vunpack.c.l.b16 %v53
  %v374 = vunpack.c.l.b16 %v54
  %v375 = vunpack.c.l.b16 %v55
  %v376 = vunpack.c.l.b16 %v56
  %v377 = vunpack.c.l.b16 %v57
  %v378 = vunpack.c.l.b16 %v58
  %v379 = vunpack.c.l.b16 %v59
  %v380 = vunpack.c.l.b16 %v60
  %v381 = vunpack.c.l.b16 %v61
  %v382 = vunpack.c.l.b16 %v62
  %v383 = vunpack.c.l.b16 %v63
  %v384 = vunpack.c.l.b16 %v64
  %v385 = vunpack.c.l.b16 %v65
  %v386 = vunpack.c.l.b16 %v66
  %v387 = vunpack.c.l.b16 %v67
  %v388 = vunpack.c.l.b16 %v68
  %v389 = vunpack.c.l.b16 %v69
  %v390 = vunpack.c.l.b16 %v70
  %v391 = vunpack.c.l.b16 %v71
  %v392 = vunpack.c.l.b16 %v72
  %v393 = vunpack.c.l.b16 %v73
  %v394 = vunpack.c.l.b16 %v74
  %v395 = vunpack.c.l.b16 %v75
  %v396 = vunpack.c.l.b16 %v76
  %v397 = vunpack.c.l.b16 %v77
  %v398 = vunpack.c.l.b16 %v78
  %v399 = vunpack.c.l.b16 %v79
  %v400 = vunpack.c.l.b16 %v80
  %v401 = vunpack.c.l.b16 %v81
  %v402 = vunpack.c.l.b16 %v82
  %v403 = vunpack.c.l.b16 %v83
  %v404 = vunpack.c.l.b16 %v84
  %v405 = vunpack.c.l.b16 %v85
  %v406 = vunpack.c.l.b16 %v86
  %v407 = vunpack.c.l.b16 %v87
  %v408 = vunpack.c.l.b16 %v88
  %v409 = vunpack.c.l.b16 %v89
  %v410 = vunpack.c.l.b16 %v90
  %v411 = vunpack.c.l.b16 %v91
  %v412 = vunpack.c.l.b16 %v92
  %v413 = vunpack.c.l.b16 %v93
  %v414 = vunpack.c.l.b16 %v94
  %v415 = vunpack.c.l.b16 %v95
  %v416 = vunpack.c.l.b16 %v96
  %v417 = vunpack.c.l.b16 %v97
  %v418 = vunpack.c.l.b16 %v98
  %v419 = vunpack.c.l.b16 %v99
  %v420 = vunpack.c.l.b16 %v100
  %v421 = vunpack.c.l.b16 %v101
  %v422 = vunpack.c.l.b16 %v102
  %v423 = vunpack.c.l.b16 %v103
  %v424 = vunpack.c.l.b16 %v104
  %v425 = vunpack.c.l.b16 %v105
  %v426 = vunpack.c.l.b16 %v106
  %v427 = vunpack.c.l.b16 %v107
  %v428 = vunpack.c.l.b16 %v108
  %v429 = vunpack.c.l.b16 %v109
  %v430 = vunpack.c.l.b16 %v110
  %v431 = vunpack.c.l.b16 %v111
  %v432 = vunpack.c.l.b16 %v112
  %v433 = vunpack.c.l.b16 %v113
  %v434 = vunpack.c.l.b16 %v114
  %v435 = vunpack.c.l.b16 %v115
  %v436 = vunpack.c.l.b16 %v116
  %v437 = vunpack.c.l.b16 %v117
  %v438 = vunpack.c.l.b16 %v118
  %v439 = vunpack.c.l.b16 %v119
  %v440 = vunpack.c.l.b16 %v120
  %v441 = vunpack.c.l.b16 %v121
  %v442 = vunpack.c.l.b16 %v122
  %v443 = vunpack.c.l.b16 %v123
  %v444 = vunpack.c.l.b16 %v124
  %v445 = vunpack.c.l.b16 %v125
  %v446 = vunpack.c.l.b16 %v126
  %v447 = vunpack.c.l.b16 %v127
  %v448 = vunpack.c.l.b16 %v128
  %v449 = vunpack.c.l.b16 %v129
  %v450 = vunpack.c.l.b16 %v130
  %v451 = vunpack.c.l.b16 %v131
  %v452 = vunpack.c.l.b16 %v132
  %v453 = vunpack.c.l.b16 %v133
  %v454 = vunpack.c.l.b16 %v134
  %v455 = vunpack.c.l.b16 %v135
  %v456 = vunpack.c.l.b16 %v136
  %v457 = vunpack.c.l.b16 %v137
  %v458 = vunpack.c.l.b16 %v138
  %v459 = vunpack.c.l.b16 %v139
  %v460 = vunpack.c.l.b16 %v140
  %v461 = vunpack.c.l.b16 %v141
  %v462 = vunpack.c.l.b16 %v142
  %v463 = vunpack.c.l.b16 %v143
  %v464 = vunpack.c.l.b16 %v144
  %v465 = vunpack.c.l.b16 %v145
  %v466 = vunpack.c.l.b16 %v146
  %v467 = vunpack.c.l.b16 %v147
  %v468 = vunpack.c.l.b16 %v148
  %v469 = vunpack.c.l.b16 %v149
  %v470 = vunpack.c.l.b16 %v150
  %v471 = vunpack.c.l.b16 %v151
  %v472 = vunpack.c.l.b16 %v152
  %v473 = vunpack.c.l.b16 %v153
  %v474 = vunpack.c.l.b16 %v154
  %v475 = vunpack.c.l.b16 %v155
  %v476 = vunpack.c.l.b16 %v156
  %v477 = vunpack.c.l.b16 %v157
  %v478 = vunpack.c.l.b16 %v158
  %v479 = vunpack.c.l.b16 %v159
  %v480 = vunpack.c.l.b16 %v160
  %v481 = vunpack.c.l.b16 %v161
  %v482 = vunpack.c.l.b16 %v162
  %v483 = vunpack.c.l.b16 %v163
  %v484 = vunpack.c.l.b16 %v164
  %v485 = vunpack.c.l.b16 %v165
  %v486 = vunpack.c.l.b16 %v166
  %v487 = vpack.c.b16 %v344, %v343
  %v488 = vpack.c.b16 %v346, %v345
  %v489 = vpack.c.b16 %v348, %v347
  %v490 = vpack.c.b16 %v350, %v349
  %v491 = vpack.c.b16 %v352, %v351
  %v492 = vpack.c.b16 %v354, %v353
  %v493 = vpack.c.b16 %v356, %v355
  %v494 = vpack.c.b16 %v358, %v357
  %v495 = vpack.c.b16 %v360, %v359
  %v496 = vpack.c.b16 %v362, %v361
  %v497 = vpack.c.b16 %v364, %v363
  %v498 = vpack.c.b16 %v366, %v365
  %v499 = vpack.c.b16 %v368, %v367
  %v500 = vpack.c.b16 %v370, %v369
  %v501 = vpack.c.b16 %v372, %v371
  %v502 = vpack.c.b16 %v374, %v373
  %v503 = vpack.c.b16 %v376, %v375
  %v504 = vpack.c.b16 %v378, %v377
  %v505 = vpack.c.b16 %v380, %v379
  %v506 = vpack.c.b16 %v382, %v381
  %v507 = vpack.c.b16 %v384, %v383
  %v508 = vpack.c.b16 %v386, %v385
  %v509 = vpack.c.b16 %v388, %v387
  %v510 = vpack.c.b16 %v390, %v389
  %v511 = vpack.c.b16 %v392, %v391
  %v512 = vpack.c.b16 %v394, %v393
  %v513 = vpack.c.b16 %v396, %v395
  %v514 = vpack.c.b16 %v398, %v397
  %v515 = vpack.c.b16 %v400, %v399
  %v516 = vpack.c.b16 %v402, %v401
  %v517 = vpack.c.b16 %v404, %v403
  %v518 = vpack.c.b16 %v406, %v405
  %v519 = vpack.c.b16 %v408, %v407
  %v520 = vpack.c.b16 %v410, %v409
  %v521 = vpack.c.b16 %v412, %v411
  %v522 = vpack.c.b16 %v414, %v413
  %v523 = vpack.c.b16 %v416, %v415
  %v524 = vpack.c.b16 %v418, %v417
  %v525 = vpack.c.b16 %v420, %v419
  %v526 = vpack.c.b16 %v422, %v421
  %v527 = vpack.c.b16 %v424, %v423
  %v528 = vpack.c.b16 %v426, %v425
  %v529 = vpack.c.b16 %v428, %v427
  %v530 = vpack.c.b16 %v430, %v429
  %v531 = vpack.c.b16 %v432, %v431
  %v532 = vpack.c.b16 %v434, %v433
  %v533 = vpack.c.b16 %v436, %v435
  %v534 = vpack.c.b16 %v438, %v437
  %v535 = vpack.c.b16 %v440, %v439
  %v536 = vpack.c.b16 %v442, %v441
  %v537 = vpack.c.b16 %v444, %v443
  %v538 = vpack.c.b16 %v446, %v445
  %v539 = vpack.c.b16 %v448, %v447
  %v540 = vpack.c.b16 %v450, %v449
  %v541 = vpack.c.b16 %v452, %v451
  %v542 = vpack.c.b16 %v454, %v453
  %v543 = vpack.c.b16 %v456, %v455
  %v544 = vpack.c.b16 %v458, %v457
  %v545 = vpack.c.b16 %v460, %v459
  %v546 = vpack.c.b16 %v462, %v461
  %v547 = vpack.c.b16 %v464, %v463
  %v548 = vpack.c.b16 %v466, %v465
  %v549 = vpack.c.b16 %v468, %v467
  %v550 = vpack.c.b16 %v470, %v469
  %v551 = vpack.c.b16 %v472, %v471
  %v552 = vpack.c.b16 %v474, %v473
  %v553 = vpack.c.b16 %v476, %v475
  %v554 = vpack.c.b16 %v478, %v477
  %v555 = vpack.c.b16 %v480, %v479
  %v556 = vpack.c.b16 %v482, %v481
  %v557 = vpack.c.b16 %v484, %v483
  %v558 = vpack.c.b16 %v486, %v485
  %631 = vmatprep.subr.bf16.mxu0 0
  %632 = vmatpush1.bf16.msra.mxu0 %v487
  %633 = vmatprep.subr.bf16.mxu0 0
  %634 = vmatpush1.bf16.msra.mxu0 %v488
  %635 = vmatprep.subr.bf16.mxu0 0
  %636 = vmatpush1.bf16.msra.mxu0 %v489
  %637 = vmatprep.subr.bf16.mxu0 0
  %638 = vmatpush1.bf16.msra.mxu0 %v490
  %639 = vmatprep.subr.bf16.mxu0 0
  %640 = vmatpush1.bf16.msra.mxu0 %v491
  %641 = vmatprep.subr.bf16.mxu0 0
  %642 = vmatpush1.bf16.msra.mxu0 %v492
  %643 = vmatprep.subr.bf16.mxu0 0
  %644 = vmatpush1.bf16.msra.mxu0 %v493
  %645 = vmatprep.subr.bf16.mxu0 0
  %646 = vmatpush1.bf16.msra.mxu0 %v494
  %647 = vmatprep.subr.bf16.mxu0 0
  %648 = vmatpush1.bf16.msra.mxu0 %v495
  %649 = vmatprep.subr.bf16.mxu0 0
  %650 = vmatpush1.bf16.msra.mxu0 %v496
  %651 = vmatprep.subr.bf16.mxu0 0
  %652 = vmatpush1.bf16.msra.mxu0 %v497
  %653 = vmatprep.subr.bf16.mxu0 0
  %654 = vmatpush1.bf16.msra.mxu0 %v498
  %655 = vmatprep.subr.bf16.mxu0 0
  %656 = vmatpush1.bf16.msra.mxu0 %v499
  %657 = vmatprep.subr.bf16.mxu0 0
  %658 = vmatpush1.bf16.msra.mxu0 %v500
  %659 = vmatprep.subr.bf16.mxu0 0
  %660 = vmatpush1.bf16.msra.mxu0 %v501
  %661 = vmatprep.subr.bf16.mxu0 0
  %662 = vmatpush1.bf16.msra.mxu0 %v502
  %663 = vmatprep.mubr.bf16.mxu0 %v182
  %664 = vmatmul.mubr.bf16.gmra.mrb[0].mxu0 %v181
  %v665 = vpop.f32.mrb[0].mxu0
  %v666 = vadd.f32 0.0, %v665
  %v667 = vpop.f32.mrb[0].mxu0
  %v668 = vpop.f32.mrb[0].mxu0
  %v669 = vpop.f32.mrb[0].mxu0
  %670 = vdwg.mxu0
  %671 = vmatprep.subr.bf16.mxu0 0
  %672 = vmatpush1.bf16.msra.mxu0 %v503
  %673 = vmatprep.subr.bf16.mxu0 0
  %674 = vmatpush1.bf16.msra.mxu0 %v504
  %675 = vmatprep.subr.bf16.mxu0 0
  %676 = vmatpush1.bf16.msra.mxu0 %v505
  %677 = vmatprep.subr.bf16.mxu0 0
  %678 = vmatpush1.bf16.msra.mxu0 %v506
  %679 = vmatprep.subr.bf16.mxu0 0
  %680 = vmatpush1.bf16.msra.mxu0 %v507
  %681 = vmatprep.subr.bf16.mxu0 0
  %682 = vmatpush1.bf16.msra.mxu0 %v508
  %683 = vmatprep.subr.bf16.mxu0 0
  %684 = vmatpush1.bf16.msra.mxu0 %v509
  %685 = vmatprep.subr.bf16.mxu0 0
  %686 = vmatpush1.bf16.msra.mxu0 %v510
  %687 = vmatprep.subr.bf16.mxu0 0
  %688 = vmatpush1.bf16.msra.mxu0 %v511
  %689 = vmatprep.subr.bf16.mxu0 0
  %690 = vmatpush1.bf16.msra.mxu0 %v512
  %691 = vmatprep.subr.bf16.mxu0 0
  %692 = vmatpush1.bf16.msra.mxu0 %v513
  %693 = vmatprep.subr.bf16.mxu0 0
  %694 = vmatpush1.bf16.msra.mxu0 %v514
  %695 = vmatprep.subr.bf16.mxu0 0
  %696 = vmatpush1.bf16.msra.mxu0 %v515
  %697 = vmatprep.subr.bf16.mxu0 0
  %698 = vmatpush1.bf16.msra.mxu0 %v516
  %699 = vmatprep.subr.bf16.mxu0 0
  %700 = vmatpush1.bf16.msra.mxu0 %v517
  %701 = vmatprep.subr.bf16.mxu0 0
  %702 = vmatpush1.bf16.msra.mxu0 %v518
  %703 = vmatprep.mubr.bf16.mxu0 %v184
  %704 = vmatmul.mubr.bf16.gmra.mrb[0].mxu0 %v183
  %v705 = vpop.f32.mrb[0].mxu0
  %v706 = vadd.f32 %v666, %v705
  %v707 = vpop.f32.mrb[0].mxu0
  %v708 = vpop.f32.mrb[0].mxu0
  %v709 = vpop.f32.mrb[0].mxu0
  %710 = vdwg.mxu0
  %711 = vmatprep.subr.bf16.mxu0 0
  %712 = vmatpush1.bf16.msra.mxu0 %v519
  %713 = vmatprep.subr.bf16.mxu0 0
  %714 = vmatpush1.bf16.msra.mxu0 %v520
  %715 = vmatprep.subr.bf16.mxu0 0
  %716 = vmatpush1.bf16.msra.mxu0 %v521
  %717 = vmatprep.subr.bf16.mxu0 0
  %718 = vmatpush1.bf16.msra.mxu0 %v522
  %719 = vmatprep.subr.bf16.mxu0 0
  %720 = vmatpush1.bf16.msra.mxu0 %v523
  %721 = vmatprep.subr.bf16.mxu0 0
  %722 = vmatpush1.bf16.msra.mxu0 %v524
  %723 = vmatprep.subr.bf16.mxu0 0
  %724 = vmatpush1.bf16.msra.mxu0 %v525
  %725 = vmatprep.subr.bf16.mxu0 0
  %726 = vmatpush1.bf16.msra.mxu0 %v526
  %727 = vmatprep.subr.bf16.mxu0 0
  %728 = vmatpush1.bf16.msra.mxu0 %v527
  %729 = vmatprep.subr.bf16.mxu0 0
  %730 = vmatpush1.bf16.msra.mxu0 %v528
  %731 = vmatprep.subr.bf16.mxu0 0
  %732 = vmatpush1.bf16.msra.mxu0 %v529
  %733 = vmatprep.subr.bf16.mxu0 0
  %734 = vmatpush1.bf16.msra.mxu0 %v530
  %735 = vmatprep.subr.bf16.mxu0 0
  %736 = vmatpush1.bf16.msra.mxu0 %v531
  %737 = vmatprep.subr.bf16.mxu0 0
  %738 = vmatpush1.bf16.msra.mxu0 %v532
  %739 = vmatprep.subr.bf16.mxu0 0
  %740 = vmatpush1.bf16.msra.mxu0 %v533
  %741 = vmatprep.subr.bf16.mxu0 0
  %742 = vmatpush1.bf16.msra.mxu0 %v534
  %743 = vmatprep.mubr.bf16.mxu0 %v186
  %744 = vmatmul.mubr.bf16.gmra.mrb[0].mxu0 %v185
  %v745 = vpop.f32.mrb[0].mxu0
  %v746 = vadd.f32 %v706, %v745
  %v747 = vpop.f32.mrb[0].mxu0
  %v748 = vpop.f32.mrb[0].mxu0
  %v749 = vpop.f32.mrb[0].mxu0
  %750 = vdwg.mxu0
  %751 = vmatprep.subr.bf16.mxu0 0
  %752 = vmatpush1.bf16.msra.mxu0 %v535
  %753 = vmatprep.subr.bf16.mxu0 0
  %754 = vmatpush1.bf16.msra.mxu0 %v536
  %755 = vmatprep.subr.bf16.mxu0 0
  %756 = vmatpush1.bf16.msra.mxu0 %v537
  %757 = vmatprep.subr.bf16.mxu0 0
  %758 = vmatpush1.bf16.msra.mxu0 %v538
  %759 = vmatprep.subr.bf16.mxu0 0
  %760 = vmatpush1.bf16.msra.mxu0 %v539
  %761 = vmatprep.subr.bf16.mxu0 0
  %762 = vmatpush1.bf16.msra.mxu0 %v540
  %763 = vmatprep.subr.bf16.mxu0 0
  %764 = vmatpush1.bf16.msra.mxu0 %v541
  %765 = vmatprep.subr.bf16.mxu0 0
  %766 = vmatpush1.bf16.msra.mxu0 %v542
  %767 = vmatprep.subr.bf16.mxu0 0
  %768 = vmatpush1.bf16.msra.mxu0 %v543
  %769 = vmatprep.subr.bf16.mxu0 0
  %770 = vmatpush1.bf16.msra.mxu0 %v544
  %771 = vmatprep.subr.bf16.mxu0 0
  %772 = vmatpush1.bf16.msra.mxu0 %v545
  %773 = vmatprep.subr.bf16.mxu0 0
  %774 = vmatpush1.bf16.msra.mxu0 %v546
  %775 = vmatprep.subr.bf16.mxu0 0
  %776 = vmatpush1.bf16.msra.mxu0 %v547
  %777 = vmatprep.subr.bf16.mxu0 0
  %778 = vmatpush1.bf16.msra.mxu0 %v548
  %779 = vmatprep.subr.bf16.mxu0 0
  %780 = vmatpush1.bf16.msra.mxu0 %v549
  %781 = vmatprep.subr.bf16.mxu0 0
  %782 = vmatpush1.bf16.msra.mxu0 %v550
  %783 = vmatprep.mubr.bf16.mxu0 %v188
  %784 = vmatmul.mubr.bf16.gmra.mrb[0].mxu0 %v187
  %v785 = vpop.f32.mrb[0].mxu0
  %v786 = vadd.f32 %v746, %v785
  %v787 = vpop.f32.mrb[0].mxu0
  %v788 = vpop.f32.mrb[0].mxu0
  %v789 = vpop.f32.mrb[0].mxu0
  %790 = vdwg.mxu0
  %791 = vmatprep.subr.bf16.mxu0 0
  %792 = vmatpush1.bf16.msra.mxu0 %v551
  %793 = vmatprep.subr.bf16.mxu0 0
  %794 = vmatpush1.bf16.msra.mxu0 %v552
  %795 = vmatprep.subr.bf16.mxu0 0
  %796 = vmatpush1.bf16.msra.mxu0 %v553
  %797 = vmatprep.subr.bf16.mxu0 0
  %798 = vmatpush1.bf16.msra.mxu0 %v554
  %799 = vmatprep.subr.bf16.mxu0 0
  %800 = vmatpush1.bf16.msra.mxu0 %v555
  %801 = vmatprep.subr.bf16.mxu0 0
  %802 = vmatpush1.bf16.msra.mxu0 %v556
  %803 = vmatprep.subr.bf16.mxu0 0
  %804 = vmatpush1.bf16.msra.mxu0 %v557
  %805 = vmatprep.subr.bf16.mxu0 0
  %806 = vmatpush1.bf16.msra.mxu0 %v558
  %807 = vmatprep.subr.bf16.mxu0 0
  %808 = vmatpush1.bf16.msra.mxu0 0
  %809 = vmatprep.subr.bf16.mxu0 0
  %810 = vmatpush1.bf16.msra.mxu0 0
  %811 = vmatprep.subr.bf16.mxu0 0
  %812 = vmatpush1.bf16.msra.mxu0 0
  %813 = vmatprep.subr.bf16.mxu0 0
  %814 = vmatpush1.bf16.msra.mxu0 0
  %815 = vmatprep.subr.bf16.mxu0 0
  %816 = vmatpush1.bf16.msra.mxu0 0
  %817 = vmatprep.subr.bf16.mxu0 0
  %818 = vmatpush1.bf16.msra.mxu0 0
  %819 = vmatprep.subr.bf16.mxu0 0
  %820 = vmatpush1.bf16.msra.mxu0 0
  %821 = vmatprep.subr.bf16.mxu0 0
  %822 = vmatpush1.bf16.msra.mxu0 0
  %823 = vmatprep.mubr.bf16.mxu0 0
  %824 = vmatmul.mubr.bf16.gmra.mrb[0].mxu0 %v189
  %v825 = vpop.f32.mrb[0].mxu0
  %v826 = vadd.f32 %v786, %v825
  %v827 = vpop.f32.mrb[0].mxu0
  %v828 = vpop.f32.mrb[0].mxu0
  %v829 = vpop.f32.mrb[0].mxu0
  %830 = vdwg.mxu0
  %v831 = vmax.f32 %v826, 0.0
  %v832 = vpack.c.bf16 %v831, %v831
  %v833 = vld [vmem:[%s2] sm:$0xf]
  %v834 = vld [vmem:[%s2 + $0x4] sm:$0xf]
  %v835 = vld [vmem:[%s2 + $0x8] sm:$0xf]
  %v836 = vld [vmem:[%s2 + $0xc] sm:$0xf]
  %v837 = vld [vmem:[%s2 + $0x10] sm:$0xf]
  %v838 = vld [vmem:[%s2 + $0x14] sm:$0xf]
  %v839 = vld [vmem:[%s2 + $0x18] sm:$0xf]
  %v840 = vld [vmem:[%s2 + $0x1c] sm:$0xf]
  %v841 = vld [vmem:[%s2 + $0x20] sm:$0xf]
  %v842 = vld [vmem:[%s2 + $0x24] sm:$0xf]
  %v843 = vld [vmem:[%s2 + $0x28] sm:$0xf]
  %v844 = vld [vmem:[%s2 + $0x2c] sm:$0xf]
  %v845 = vld [vmem:[%s2 + $0x30] sm:$0xf]
  %v846 = vld [vmem:[%s2 + $0x34] sm:$0xf]
  %v847 = vld [vmem:[%s2 + $0x38] sm:$0xf]
  %v848 = vld [vmem:[%s2 + $0x3c] sm:$0xf]
  %v865 = vunpack.c.l.b16 %v833
  %v866 = vunpack.c.l.b16 %v834
  %v867 = vunpack.c.l.b16 %v835
  %v868 = vunpack.c.l.b16 %v836
  %v869 = vunpack.c.l.b16 %v837
  %v870 = vunpack.c.l.b16 %v838
  %v871 = vunpack.c.l.b16 %v839
  %v872 = vunpack.c.l.b16 %v840
  %v873 = vunpack.c.l.b16 %v841
  %v874 = vunpack.c.l.b16 %v842
  %v875 = vunpack.c.l.b16 %v843
  %v876 = vunpack.c.l.b16 %v844
  %v877 = vunpack.c.l.b16 %v845
  %v878 = vunpack.c.l.b16 %v846
  %v879 = vunpack.c.l.b16 %v847
  %v880 = vunpack.c.l.b16 %v848
  %v881 = vpack.c.b16 %v866, %v865
  %v882 = vpack.c.b16 %v868, %v867
  %v883 = vpack.c.b16 %v870, %v869
  %v884 = vpack.c.b16 %v872, %v871
  %v885 = vpack.c.b16 %v874, %v873
  %v886 = vpack.c.b16 %v876, %v875
  %v887 = vpack.c.b16 %v878, %v877
  %v888 = vpack.c.b16 %v880, %v879
  %897 = vmatprep.subr.bf16.mxu0 0
  %898 = vmatpush1.bf16.msra.mxu0 %v881
  %899 = vmatprep.subr.bf16.mxu0 0
  %900 = vmatpush1.bf16.msra.mxu0 %v882
  %901 = vmatprep.subr.bf16.mxu0 0
  %902 = vmatpush1.bf16.msra.mxu0 %v883
  %903 = vmatprep.subr.bf16.mxu0 0
  %904 = vmatpush1.bf16.msra.mxu0 %v884
  %905 = vmatprep.subr.bf16.mxu0 0
  %906 = vmatpush1.bf16.msra.mxu0 %v885
  %907 = vmatprep.subr.bf16.mxu0 0
  %908 = vmatpush1.bf16.msra.mxu0 %v886
  %909 = vmatprep.subr.bf16.mxu0 0
  %910 = vmatpush1.bf16.msra.mxu0 %v887
  %911 = vmatprep.subr.bf16.mxu0 0
  %912 = vmatpush1.bf16.msra.mxu0 %v888
  %913 = vmatprep.subr.bf16.mxu0 0
  %914 = vmatpush1.bf16.msra.mxu0 0
  %915 = vmatprep.subr.bf16.mxu0 0
  %916 = vmatpush1.bf16.msra.mxu0 0
  %917 = vmatprep.subr.bf16.mxu0 0
  %918 = vmatpush1.bf16.msra.mxu0 0
  %919 = vmatprep.subr.bf16.mxu0 0
  %920 = vmatpush1.bf16.msra.mxu0 0
  %921 = vmatprep.subr.bf16.mxu0 0
  %922 = vmatpush1.bf16.msra.mxu0 0
  %923 = vmatprep.subr.bf16.mxu0 0
  %924 = vmatpush1.bf16.msra.mxu0 0
  %925 = vmatprep.subr.bf16.mxu0 0
  %926 = vmatpush1.bf16.msra.mxu0 0
  %927 = vmatprep.subr.bf16.mxu0 0
  %928 = vmatpush1.bf16.msra.mxu0 0
  %929 = vmatprep.mubr.bf16.mxu0 0
  %930 = vmatmul.mubr.bf16.gmra.mrb[0].mxu0 %v832
  %v931 = vpop.f32.mrb[0].mxu0
  %v932 = vadd.f32 0.0, %v931
  %v933 = vpop.f32.mrb[0].mxu0
  %v934 = vpop.f32.mrb[0].mxu0
  %v935 = vpop.f32.mrb[0].mxu0
  %936 = vdwg.mxu0
  %v937 = vlaneseq
  %v938 = vand.u32 %v937, 127
  %vm939 = vcmp.ge.s32.totalorder %v938, 0
  %vm940 = vcmp.lt.s32.totalorder %v938, 2
  %vm941 = vmand %vm939, %vm940
  %v942 = vsel %vm941, %v932, -1e+30
  %943 = vmax.xlane.f32.xlu0 %v942
  %v944 = vpop.xlane.xlu0 %943
  %v945 = vsel %vm941, %v944, 0.0
  %vm946 = vcmp.ge.s32.totalorder %v938, 2
  %vm947 = vcmp.lt.s32.totalorder %v938, 6
  %vm948 = vmand %vm946, %vm947
  %v949 = vsel %vm948, %v932, -1e+30
  %950 = vmax.xlane.f32.xlu0 %v949
  %v951 = vpop.xlane.xlu0 %950
  %v952 = vsel %vm948, %v951, %v945
  %vm953 = vcmp.ge.s32.totalorder %v938, 6
  %vm954 = vcmp.lt.s32.totalorder %v938, 14
  %vm955 = vmand %vm953, %vm954
  %v956 = vsel %vm955, %v932, -1e+30
  %957 = vmax.xlane.f32.xlu0 %v956
  %v958 = vpop.xlane.xlu0 %957
  %v959 = vsel %vm955, %v958, %v952
  %vm960 = vcmp.ge.s32.totalorder %v938, 14
  %vm961 = vcmp.lt.s32.totalorder %v938, 30
  %vm962 = vmand %vm960, %vm961
  %v963 = vsel %vm962, %v932, -1e+30
  %964 = vmax.xlane.f32.xlu0 %v963
  %v965 = vpop.xlane.xlu0 %964
  %v966 = vsel %vm962, %v965, %v959
  %vm967 = vcmp.ge.s32.totalorder %v938, 30
  %vm968 = vcmp.lt.s32.totalorder %v938, 62
  %vm969 = vmand %vm967, %vm968
  %v970 = vsel %vm969, %v932, -1e+30
  %971 = vmax.xlane.f32.xlu0 %v970
  %v972 = vpop.xlane.xlu0 %971
  %v973 = vsel %vm969, %v972, %v966
  %v974 = vsub.f32 %v932, %v973
  %v975 = vmul.f32 %v974, 1.442695
  %v976 = vpow.pop %v975
  %v977 = vsel %vm941, %v976, 0.0
  %978 = vadd.xlane.f32.xlu0 %v977
  %v979 = vpop.xlane.xlu0 %978
  %v980 = vrcp.pop %v979
  %v981 = vmul.f32 %v979, %v980
  %v982 = vsub.f32 2.0, %v981
  %v983 = vmul.f32 %v980, %v982
  %v984 = vsel %vm941, %v983, 0.0
  %v985 = vsel %vm948, %v976, 0.0
  %986 = vadd.xlane.f32.xlu0 %v985
  %v987 = vpop.xlane.xlu0 %986
  %v988 = vrcp.pop %v987
  %v989 = vmul.f32 %v987, %v988
  %v990 = vsub.f32 2.0, %v989
  %v991 = vmul.f32 %v988, %v990
  %v992 = vsel %vm948, %v991, %v984
  %v993 = vsel %vm955, %v976, 0.0
  %994 = vadd.xlane.f32.xlu0 %v993
  %v995 = vpop.xlane.xlu0 %994
  %v996 = vrcp.pop %v995
  %v997 = vmul.f32 %v995, %v996
  %v998 = vsub.f32 2.0, %v997
  %v999 = vmul.f32 %v996, %v998
  %v1000 = vsel %vm955, %v999, %v992
  %v1001 = vsel %vm962, %v976, 0.0
  %1002 = vadd.xlane.f32.xlu0 %v1001
  %v1003 = vpop.xlane.xlu0 %1002
  %v1004 = vrcp.pop %v1003
  %v1005 = vmul.f32 %v1003, %v1004
  %v1006 = vsub.f32 2.0, %v1005
  %v1007 = vmul.f32 %v1004, %v1006
  %v1008 = vsel %vm962, %v1007, %v1000
  %v1009 = vsel %vm969, %v976, 0.0
  %1010 = vadd.xlane.f32.xlu0 %v1009
  %v1011 = vpop.xlane.xlu0 %1010
  %v1012 = vrcp.pop %v1011
  %v1013 = vmul.f32 %v1011, %v1012
  %v1014 = vsub.f32 2.0, %v1013
  %v1015 = vmul.f32 %v1012, %v1014
  %v1016 = vsel %vm969, %v1015, %v1008
  %v1017 = vmul.f32 %v976, %v1016
  %v1018 = vld [vmem:[%s3] sm:$0xff]
  %v1019 = vadd.s32 %v1018, 30
  %1020 = vset.pattern.permute.xlu0 0
  %1021 = vperm.xlu0 %1020, %v1019
  %v1022 = vpop.permute.xlu0 %1021
  %vm1023 = vcmp.eq.s32.totalorder %v938, %v1022
  %v1024 = vsel %vm1023, 1, 0
  %v1025 = vcvt.s32.f32 %v1024
  %v1026 = vmul.f32 %v1025, %v932
  %1027 = vadd.xlane.f32.xlu0 %v1026
  %v1028 = vpop.xlane.xlu0 %1027
  %v1029 = vlog2.pop %v1011
  %v1030 = vmul.f32 %v1029, 0.6931472
  %v1031 = vadd.f32 %v972, %v1030
  %v1032 = vsub.f32 %v1031, %v1028
  %vm1033 = vcmp.eq.s32.totalorder %v938, 64
  %v1034 = vsel %vm1033, %v1032, 0.0
  %v1035 = vadd.f32 %v1017, %v1034
  %1036 = vst [vmem:[%s4] sm:$0xff] %v1035
  // Predicated region
  $region18: #{hafeat_forward.1} parent=0 // pred_check
    _
  $region19: #{hafeat_forward.1} parent=0 // pred_check_branch
    %1038 = sbr.rel (0) target = $region21
  $region20: #{hafeat_forward.1} parent=0 // pred_region
    _
  $region21: #{hafeat_forward.1} parent=0 // pred_fallthru
    _
  // Predicated region
  $region22: #{hafeat_forward.1} parent=0 // pred_check
    _
  $region23: #{hafeat_forward.1} parent=0 // pred_check_branch
    %1040 = sbr.rel (0) target = $region25
  $region24: #{hafeat_forward.1} parent=0 // pred_region
    _
  $region25: #{hafeat_forward.1} parent=0 // pred_fallthru
    _

</llo_original>
